<compile_context>
chip_gen: v7x
topology: tpu7x:2x2x1
jax: 0.10.0
libtpu: 0.0.40
codegen_flags: <defaults>
</compile_context>

<pallas_src>
import jax
import jax.numpy as jnp
from jax.experimental import pallas as pl
from jax.experimental.pallas import tpu as pltpu

IN_DIM = 28 * 28   # 784
HID = 64
OUT = 10


def _round_up(n, m):
    return ((n + m - 1) // m) * m


def mlp_kernel(x_ref, w1_ref, b1_ref, w2_ref, b2_ref, o_ref):
    # x_ref : (TB, 784) bf16   w1_ref: (784, 64) bf16   b1_ref: (1, 64) f32
    # w2_ref: (64, 10)  f32    b2_ref: (1, 10)   f32    o_ref : (TB, 10) f32

    # ---- Linear 1 + ReLU (bf16 MXU matmul, f32 accumulate) ----
    h = jnp.dot(x_ref[...], w1_ref[...], preferred_element_type=jnp.float32)
    h = jnp.maximum(h + b1_ref[...], 0.0)

    # ---- Linear 2 (tiny 64x10, keep f32) ----
    logits = jnp.dot(h, w2_ref[...], preferred_element_type=jnp.float32) + b2_ref[...]

    # ---- log_softmax along dim=1 (numerically stable) ----
    m = jnp.max(logits, axis=-1, keepdims=True)
    shifted = logits - m
    lse = jnp.log(jnp.sum(jnp.exp(shifted), axis=-1, keepdims=True))
    o_ref[...] = (shifted - lse).astype(o_ref.dtype)


def mlp_forward(x_nchw, w1, b1, w2, b2, *, tile_b=1024):
    """x_nchw: (B, 1, 28, 28) float32.  Returns (B, 10) f32 log-probabilities."""
    B = x_nchw.shape[0]
    # Same flattening as torch.view(-1, 784); cast activation stream to bf16.
    x2d = x_nchw.reshape(B, IN_DIM).astype(jnp.bfloat16)

    # Batch tile: multiple of 16 (bf16 sublane packing), capped at tile_b.
    TB = min(tile_b, _round_up(B, 16))
    B_pad = _round_up(B, TB)
    if B_pad != B:
        x2d = jnp.pad(x2d, ((0, B_pad - B), (0, 0)))

    w1_t = w1.T.astype(jnp.bfloat16)            # (784, 64) bf16, resident
    b1_2d = b1.reshape(1, HID).astype(jnp.float32)
    w2_t = w2.T.astype(jnp.float32)             # (64, 10)
    b2_2d = b2.reshape(1, OUT).astype(jnp.float32)

    grid = (B_pad // TB,)

    # VMEM budget: double-buffered x/out tiles + resident params + headroom.
    vmem_limit = int(
        2 * TB * IN_DIM * 2            # bf16 input tiles (double-buffered)
        + 2 * TB * OUT * 4             # f32 output tiles (double-buffered)
        + IN_DIM * HID * 2 + HID * 4   # w1 (bf16), b1 (f32)
        + HID * OUT * 4 + OUT * 4      # w2, b2 (f32)
    ) + (4 << 20)                      # headroom for compiler scratch

    out = pl.pallas_call(
        mlp_kernel,
        out_shape=jax.ShapeDtypeStruct((B_pad, OUT), jnp.float32),
        grid=grid,
        in_specs=[
            pl.BlockSpec((TB, IN_DIM), lambda i: (i, 0)),   # streamed activations
            pl.BlockSpec((IN_DIM, HID), lambda i: (0, 0)),  # resident weights
            pl.BlockSpec((1, HID), lambda i: (0, 0)),
            pl.BlockSpec((HID, OUT), lambda i: (0, 0)),
            pl.BlockSpec((1, OUT), lambda i: (0, 0)),
        ],
        out_specs=pl.BlockSpec((TB, OUT), lambda i: (i, 0)),
        compiler_params=pltpu.CompilerParams(
            dimension_semantics=("parallel",),   # lets v7x shard tiles over 2 TCs
            vmem_limit_bytes=vmem_limit,
        ),
    )(x2d, w1_t, b1_2d, w2_t, b2_2d)
    return out[:B]


def init_params(key):
    """Deterministic init matching nn.Linear shapes (PyTorch (out, in) weight)."""
    k1, k2, k3, k4 = jax.random.split(key, 4)
    lim1 = 1.0 / (IN_DIM) ** 0.5
    lim2 = 1.0 / HID ** 0.5
    w1 = jax.random.uniform(k1, (HID, IN_DIM), jnp.float32, -lim1, lim1)
    b1 = jax.random.uniform(k2, (HID,), jnp.float32, -lim1, lim1)
    w2 = jax.random.uniform(k3, (OUT, HID), jnp.float32, -lim2, lim2)
    b2 = jax.random.uniform(k4, (OUT,), jnp.float32, -lim2, lim2)
    return w1, b1, w2, b2


def reference_forward(x_nchw, w1, b1, w2, b2):
    """Plain-JAX f32 reference mirroring the PyTorch forward."""
    x = x_nchw.reshape(x_nchw.shape[0], -1)
    h = jnp.maximum(x @ w1.T + b1, 0.0)
    logits = h @ w2.T + b2
    return jax.nn.log_softmax(logits, axis=1)


if __name__ == "__main__":
    key = jax.random.PRNGKey(0)
    kx, kp = jax.random.split(key)

    B = 6  # small, deliberately not a multiple of the tile -> exercises padding
    x = jax.random.normal(kx, (B, 1, 28, 28), jnp.float32)   # NCHW like MNIST
    w1, b1, w2, b2 = init_params(kp)

    out = mlp_forward(x, w1, b1, w2, b2)
    out = jax.block_until_ready(out)

    ref = reference_forward(x, w1, b1, w2, b2)
    assert out.shape == (B, OUT)
    # bf16 activation stream -> compare against the f32 reference at a looser tol.
    assert jnp.allclose(out, ref, atol=2e-2, rtol=2e-2), "mismatch vs reference"

    print("KERNEL_OK")
</pallas_src>

<mosaic_0001>
module attributes {stable_mosaic.version = 11 : i64} {
  func.func @mlp_kernel(%arg0: i32, %arg1: memref<16x784xbf16, #tpu.memory_space<vmem>>, %arg2: memref<784x64xbf16, #tpu.memory_space<vmem>>, %arg3: memref<1x64xf32, #tpu.memory_space<vmem>>, %arg4: memref<64x10xf32, #tpu.memory_space<vmem>>, %arg5: memref<1x10xf32, #tpu.memory_space<vmem>>, %arg6: memref<16x10xf32, #tpu.memory_space<vmem>>) attributes {dimension_semantics = [#tpu.dimension_semantics<parallel>], iteration_bounds = array<i64: 1>, scalar_prefetch = 0 : i64, scratch_operands = 0 : i64, tpu.core_type = #tpu.core_type<tc>, window_params = [{transform_indices = @transform_0, window_bounds = array<i64: 16, 784>}, {pipeline_mode = #tpu.pipeline_mode<synchronous>, transform_indices = @transform_1, window_bounds = array<i64: 784, 64>}, {pipeline_mode = #tpu.pipeline_mode<synchronous>, transform_indices = @transform_2, window_bounds = array<i64: 1, 64>}, {pipeline_mode = #tpu.pipeline_mode<synchronous>, transform_indices = @transform_3, window_bounds = array<i64: 64, 10>}, {pipeline_mode = #tpu.pipeline_mode<synchronous>, transform_indices = @transform_4, window_bounds = array<i64: 1, 10>}, {transform_indices = @transform_5, window_bounds = array<i64: 16, 10>}]} {
    %c0 = arith.constant 0 : index
    %c0_0 = arith.constant 0 : index
    %0 = vector.load %arg1[%c0, %c0_0] : memref<16x784xbf16, #tpu.memory_space<vmem>>, vector<16x784xbf16>
    %c0_1 = arith.constant 0 : index
    %c0_2 = arith.constant 0 : index
    %1 = vector.load %arg2[%c0_1, %c0_2] : memref<784x64xbf16, #tpu.memory_space<vmem>>, vector<784x64xbf16>
    %cst = arith.constant dense<0.000000e+00> : vector<16x64xf32>
    %2 = tpu.matmul %0, %1, %cst {dimension_numbers = #tpu.dot_dimension_numbers<[1], [0], [0], [1], [0, 0, 1, 1], [], []>} : vector<16x784xbf16>, vector<784x64xbf16>, vector<16x64xf32> -> vector<16x64xf32>
    %c0_3 = arith.constant 0 : index
    %c0_4 = arith.constant 0 : index
    %3 = vector.load %arg3[%c0_3, %c0_4] : memref<1x64xf32, #tpu.memory_space<vmem>>, vector<1x64xf32>
    %4 = vector.broadcast %3 : vector<1x64xf32> to vector<16x64xf32>
    %5 = arith.addf %2, %4 : vector<16x64xf32>
    %cst_5 = arith.constant 0.000000e+00 : f32
    %6 = vector.broadcast %cst_5 : f32 to vector<16x64xf32>
    %7 = arith.maximumf %5, %6 : vector<16x64xf32>
    %c0_6 = arith.constant 0 : index
    %c0_7 = arith.constant 0 : index
    %8 = vector.load %arg4[%c0_6, %c0_7] : memref<64x10xf32, #tpu.memory_space<vmem>>, vector<64x10xf32>
    %cst_8 = arith.constant dense<0.000000e+00> : vector<16x10xf32>
    %9 = tpu.matmul %7, %8, %cst_8 {dimension_numbers = #tpu.dot_dimension_numbers<[1], [0], [0], [1], [0, 0, 1, 1], [], []>} : vector<16x64xf32>, vector<64x10xf32>, vector<16x10xf32> -> vector<16x10xf32>
    %c0_9 = arith.constant 0 : index
    %c0_10 = arith.constant 0 : index
    %10 = vector.load %arg5[%c0_9, %c0_10] : memref<1x10xf32, #tpu.memory_space<vmem>>, vector<1x10xf32>
    %11 = vector.broadcast %10 : vector<1x10xf32> to vector<16x10xf32>
    %12 = arith.addf %9, %11 : vector<16x10xf32>
    %cst_11 = arith.constant dense<0xFF800000> : vector<16xf32>
    %13 = vector.multi_reduction <maximumf>, %12, %cst_11 [1] : vector<16x10xf32> to vector<16xf32>
    %14 = vector.shape_cast %13 : vector<16xf32> to vector<16x1xf32>
    %15 = vector.broadcast %14 : vector<16x1xf32> to vector<16x10xf32>
    %16 = arith.subf %12, %15 : vector<16x10xf32>
    %17 = math.exp %16 : vector<16x10xf32>
    %cst_12 = arith.constant dense<0.000000e+00> : vector<16xf32>
    %18 = vector.multi_reduction <add>, %17, %cst_12 [1] : vector<16x10xf32> to vector<16xf32>
    %19 = vector.shape_cast %18 : vector<16xf32> to vector<16x1xf32>
    %20 = math.log %19 : vector<16x1xf32>
    %21 = vector.broadcast %20 : vector<16x1xf32> to vector<16x10xf32>
    %22 = arith.subf %16, %21 : vector<16x10xf32>
    %c0_13 = arith.constant 0 : index
    %c0_14 = arith.constant 0 : index
    %23 = vector.load %arg6[%c0_13, %c0_14] : memref<16x10xf32, #tpu.memory_space<vmem>>, vector<16x10xf32>
    tpu.vector_store %arg6[%c0_13, %c0_14], %22 {strides = array<i32>} : memref<16x10xf32, #tpu.memory_space<vmem>>, vector<16x10xf32>,
    return
  }
  func.func @transform_0(%arg0: i32) -> (i32, i32) {
    %c0_i32 = arith.constant 0 : i32
    %c0_i32_0 = arith.constant 0 : i32
    return %arg0, %c0_i32 : i32, i32
  }
  func.func @transform_1(%arg0: i32) -> (i32, i32) {
    %c0_i32 = arith.constant 0 : i32
    %c0_i32_0 = arith.constant 0 : i32
    %c0_i32_1 = arith.constant 0 : i32
    return %c0_i32, %c0_i32_0 : i32, i32
  }
  func.func @transform_2(%arg0: i32) -> (i32, i32) {
    %c0_i32 = arith.constant 0 : i32
    %c0_i32_0 = arith.constant 0 : i32
    %c0_i32_1 = arith.constant 0 : i32
    return %c0_i32, %c0_i32_0 : i32, i32
  }
  func.func @transform_3(%arg0: i32) -> (i32, i32) {
    %c0_i32 = arith.constant 0 : i32
    %c0_i32_0 = arith.constant 0 : i32
    %c0_i32_1 = arith.constant 0 : i32
    return %c0_i32, %c0_i32_0 : i32, i32
  }
  func.func @transform_4(%arg0: i32) -> (i32, i32) {
    %c0_i32 = arith.constant 0 : i32
    %c0_i32_0 = arith.constant 0 : i32
    %c0_i32_1 = arith.constant 0 : i32
    return %c0_i32, %c0_i32_0 : i32, i32
  }
  func.func @transform_5(%arg0: i32) -> (i32, i32) {
    %c0_i32 = arith.constant 0 : i32
    %c0_i32_0 = arith.constant 0 : i32
    return %arg0, %c0_i32 : i32, i32
  }
}

</mosaic_0001>

<llo_original>
// kernel: tpu_custom_call.1
$region0: #{tpu_custom_call.1}
  #allocation0 [shape = 'u32[]', space=smem, size = 0x4, offset = 0x4, fixed_abs, tag = 'smem constant byte address 0x4 - core index']
  #allocation1 [shape = 'u32[144,128]{1,0:T(1,128)}', space=vmem, size = 0x12000, scoped, tag = 'internal scratch']
  %s0 = inlined_call_operand.vmem [shape: bf16[16,784], index: 0, kind: input, shape index: {}]
  %s1 = inlined_call_operand.vmem [shape: bf16[784,64], index: 1, kind: input, shape index: {}]
  %s2 = inlined_call_operand.vmem [shape: f32[1,64], index: 2, kind: input, shape index: {}]
  %s3 = inlined_call_operand.vmem [shape: f32[64,10], index: 3, kind: input, shape index: {}]
  %s4 = inlined_call_operand.vmem [shape: f32[1,10], index: 4, kind: input, shape index: {}]
  %s5 = inlined_call_operand.hbm [shape: f32[16,10], index: 5, kind: output, shape index: {}]
  %s6 = sld [smem:[#allocation0]]
  $region30: #{tpu_custom_call.1} parent=0
    _
  %s8 = ssub.s32 1, %s6
  %s9 = scalar_select 0, %s8, %s6
  $region1: #{tpu_custom_call.1} parent=0
    #allocation2 [shape = 'u8[8192]{0}', space=vmem, size = 0x2000, scoped, tag = 'output window, operand 0, single buffered']
    #allocation3 [shape = 's32[1]{0}', space=sflag, size = 0x4, scoped, tag = 'scoped memory for tpu_custom_call.1']
    %10 = vsyncpa [#allocation3], 0
    // Predicated region
    $region2: #{tpu_custom_call.1} parent=1 // pred_check
      _
    $region3: #{tpu_custom_call.1} parent=1 // pred_check_branch
      %12 = sbr.rel (0) target = $region5
    $region4: #{tpu_custom_call.1} parent=1 // pred_region
      _
    $region5: #{tpu_custom_call.1} parent=1 // pred_fallthru
      _
    // Predicated region
    $region6: #{tpu_custom_call.1} parent=1 // pred_check
      _
    $region7: #{tpu_custom_call.1} parent=1 // pred_check_branch
      %14 = sbr.rel (0) target = $region9
    $region8: #{tpu_custom_call.1} parent=1 // pred_region
      _
    $region9: #{tpu_custom_call.1} parent=1 // pred_fallthru
      _
    // Predicated region
    $region10: #{tpu_custom_call.1} parent=1 // pred_check
      _
    $region11: #{tpu_custom_call.1} parent=1 // pred_check_branch
      %16 = sbr.rel (0) target = $region13
    $region12: #{tpu_custom_call.1} parent=1 // pred_region
      _
    $region13: #{tpu_custom_call.1} parent=1 // pred_fallthru
      _
    // Predicated region
    $region14: #{tpu_custom_call.1} parent=1 // pred_check
      _
    $region15: #{tpu_custom_call.1} parent=1 // pred_check_branch
      %18 = sbr.rel (0) target = $region17
    $region16: #{tpu_custom_call.1} parent=1 // pred_region
      _
    $region17: #{tpu_custom_call.1} parent=1 // pred_fallthru
      _
    // Predicated region
    $region18: #{tpu_custom_call.1} parent=1 // pred_check
      _
    $region19: #{tpu_custom_call.1} parent=1 // pred_check_branch
      %20 = sbr.rel (0) target = $region21
    $region20: #{tpu_custom_call.1} parent=1 // pred_region
      _
    $region21: #{tpu_custom_call.1} parent=1 // pred_fallthru
      _
    %v22 = vld [vmem:[%s0] sm:$0xff]
    %v23 = vld [vmem:[%s0 + $0x8] sm:$0xff]
    %v24 = vld [vmem:[%s0 + $0x10] sm:$0xff]
    %v25 = vld [vmem:[%s0 + $0x18] sm:$0xf]
    %v26 = vld [vmem:[%s0 + $0x1c] sm:$0xff]
    %v27 = vld [vmem:[%s0 + $0x24] sm:$0xff]
    %v28 = vld [vmem:[%s0 + $0x2c] sm:$0xff]
    %v29 = vld [vmem:[%s0 + $0x34] sm:$0xf]
    %v30 = vld [vmem:[%s1] sm:$0xf]
    %v31 = vld [vmem:[%s1 + $0x4] sm:$0xf]
    %v32 = vld [vmem:[%s1 + $0x8] sm:$0xf]
    %v33 = vld [vmem:[%s1 + $0xc] sm:$0xf]
    %v34 = vld [vmem:[%s1 + $0x10] sm:$0xf]
    %v35 = vld [vmem:[%s1 + $0x14] sm:$0xf]
    %v36 = vld [vmem:[%s1 + $0x18] sm:$0xf]
    %v37 = vld [vmem:[%s1 + $0x1c] sm:$0xf]
    %v38 = vld [vmem:[%s1 + $0x20] sm:$0xf]
    %v39 = vld [vmem:[%s1 + $0x24] sm:$0xf]
    %v40 = vld [vmem:[%s1 + $0x28] sm:$0xf]
    %v41 = vld [vmem:[%s1 + $0x2c] sm:$0xf]
    %v42 = vld [vmem:[%s1 + $0x30] sm:$0xf]
    %v43 = vld [vmem:[%s1 + $0x34] sm:$0xf]
    %v44 = vld [vmem:[%s1 + $0x38] sm:$0xf]
    %v45 = vld [vmem:[%s1 + $0x3c] sm:$0xf]
    %v46 = vld [vmem:[%s1 + $0x40] sm:$0xf]
    %v47 = vld [vmem:[%s1 + $0x44] sm:$0xf]
    %v48 = vld [vmem:[%s1 + $0x48] sm:$0xf]
    %v49 = vld [vmem:[%s1 + $0x4c] sm:$0xf]
    %v50 = vld [vmem:[%s1 + $0x50] sm:$0xf]
    %v51 = vld [vmem:[%s1 + $0x54] sm:$0xf]
    %v52 = vld [vmem:[%s1 + $0x58] sm:$0xf]
    %v53 = vld [vmem:[%s1 + $0x5c] sm:$0xf]
    %v54 = vld [vmem:[%s1 + $0x60] sm:$0xf]
    %v55 = vld [vmem:[%s1 + $0x64] sm:$0xf]
    %v56 = vld [vmem:[%s1 + $0x68] sm:$0xf]
    %v57 = vld [vmem:[%s1 + $0x6c] sm:$0xf]
    %v58 = vld [vmem:[%s1 + $0x70] sm:$0xf]
    %v59 = vld [vmem:[%s1 + $0x74] sm:$0xf]
    %v60 = vld [vmem:[%s1 + $0x78] sm:$0xf]
    %v61 = vld [vmem:[%s1 + $0x7c] sm:$0xf]
    %v62 = vld [vmem:[%s1 + $0x80] sm:$0xf]
    %v63 = vld [vmem:[%s1 + $0x84] sm:$0xf]
    %v64 = vld [vmem:[%s1 + $0x88] sm:$0xf]
    %v65 = vld [vmem:[%s1 + $0x8c] sm:$0xf]
    %v66 = vld [vmem:[%s1 + $0x90] sm:$0xf]
    %v67 = vld [vmem:[%s1 + $0x94] sm:$0xf]
    %v68 = vld [vmem:[%s1 + $0x98] sm:$0xf]
    %v69 = vld [vmem:[%s1 + $0x9c] sm:$0xf]
    %v70 = vld [vmem:[%s1 + $0xa0] sm:$0xf]
    %v71 = vld [vmem:[%s1 + $0xa4] sm:$0xf]
    %v72 = vld [vmem:[%s1 + $0xa8] sm:$0xf]
    %v73 = vld [vmem:[%s1 + $0xac] sm:$0xf]
    %v74 = vld [vmem:[%s1 + $0xb0] sm:$0xf]
    %v75 = vld [vmem:[%s1 + $0xb4] sm:$0xf]
    %v76 = vld [vmem:[%s1 + $0xb8] sm:$0xf]
    %v77 = vld [vmem:[%s1 + $0xbc] sm:$0xf]
    %v78 = vld [vmem:[%s1 + $0xc0] sm:$0xf]
    %v79 = vld [vmem:[%s1 + $0xc4] sm:$0xf]
    %v80 = vld [vmem:[%s1 + $0xc8] sm:$0xf]
    %v81 = vld [vmem:[%s1 + $0xcc] sm:$0xf]
    %v82 = vld [vmem:[%s1 + $0xd0] sm:$0xf]
    %v83 = vld [vmem:[%s1 + $0xd4] sm:$0xf]
    %v84 = vld [vmem:[%s1 + $0xd8] sm:$0xf]
    %v85 = vld [vmem:[%s1 + $0xdc] sm:$0xf]
    %v86 = vld [vmem:[%s1 + $0xe0] sm:$0xf]
    %v87 = vld [vmem:[%s1 + $0xe4] sm:$0xf]
    %v88 = vld [vmem:[%s1 + $0xe8] sm:$0xf]
    %v89 = vld [vmem:[%s1 + $0xec] sm:$0xf]
    %v90 = vld [vmem:[%s1 + $0xf0] sm:$0xf]
    %v91 = vld [vmem:[%s1 + $0xf4] sm:$0xf]
    %v92 = vld [vmem:[%s1 + $0xf8] sm:$0xf]
    %v93 = vld [vmem:[%s1 + $0xfc] sm:$0xf]
    %v94 = vld [vmem:[%s1 + $0x100] sm:$0xf]
    %v95 = vld [vmem:[%s1 + $0x104] sm:$0xf]
    %v96 = vld [vmem:[%s1 + $0x108] sm:$0xf]
    %v97 = vld [vmem:[%s1 + $0x10c] sm:$0xf]
    %v98 = vld [vmem:[%s1 + $0x110] sm:$0xf]
    %v99 = vld [vmem:[%s1 + $0x114] sm:$0xf]
    %v100 = vld [vmem:[%s1 + $0x118] sm:$0xf]
    %v101 = vld [vmem:[%s1 + $0x11c] sm:$0xf]
    %v102 = vld [vmem:[%s1 + $0x120] sm:$0xf]
    %v103 = vld [vmem:[%s1 + $0x124] sm:$0xf]
    %v104 = vld [vmem:[%s1 + $0x128] sm:$0xf]
    %v105 = vld [vmem:[%s1 + $0x12c] sm:$0xf]
    %v106 = vld [vmem:[%s1 + $0x130] sm:$0xf]
    %v107 = vld [vmem:[%s1 + $0x134] sm:$0xf]
    %v108 = vld [vmem:[%s1 + $0x138] sm:$0xf]
    %v109 = vld [vmem:[%s1 + $0x13c] sm:$0xf]
    %v110 = vld [vmem:[%s1 + $0x140] sm:$0xf]
    %v111 = vld [vmem:[%s1 + $0x144] sm:$0xf]
    %v112 = vld [vmem:[%s1 + $0x148] sm:$0xf]
    %v113 = vld [vmem:[%s1 + $0x14c] sm:$0xf]
    %v114 = vld [vmem:[%s1 + $0x150] sm:$0xf]
    %v115 = vld [vmem:[%s1 + $0x154] sm:$0xf]
    %v116 = vld [vmem:[%s1 + $0x158] sm:$0xf]
    %v117 = vld [vmem:[%s1 + $0x15c] sm:$0xf]
    %v118 = vld [vmem:[%s1 + $0x160] sm:$0xf]
    %v119 = vld [vmem:[%s1 + $0x164] sm:$0xf]
    %v120 = vld [vmem:[%s1 + $0x168] sm:$0xf]
    %v121 = vld [vmem:[%s1 + $0x16c] sm:$0xf]
    %v122 = vld [vmem:[%s1 + $0x170] sm:$0xf]
    %v123 = vld [vmem:[%s1 + $0x174] sm:$0xf]
    %v124 = vld [vmem:[%s1 + $0x178] sm:$0xf]
    %v125 = vld [vmem:[%s1 + $0x17c] sm:$0xf]
    %v126 = vld [vmem:[%s1 + $0x180] sm:$0xf]
    %v127 = vld [vmem:[%s1 + $0x184] sm:$0xf]
    %v128 = vld [vmem:[%s2] sm:$0x1]
    %v130 = vlaneseq
    %v131 = vshrl.u32 %v130, 7
    %v132 = vsub.s32 0, %v131
    %v133 = vrot.slane %v128, %v132
    %v143 = vunpack.c.l.b16 %v22
    %v144 = vunpack.c.h.b16 %v22
    %v145 = vunpack.c.l.b16 %v23
    %v146 = vunpack.c.h.b16 %v23
    %v147 = vunpack.c.l.b16 %v24
    %v148 = vunpack.c.h.b16 %v24
    %v149 = vunpack.c.l.b16 %v25
    %v150 = vunpack.c.l.b16 %v26
    %v151 = vunpack.c.h.b16 %v26
    %v152 = vunpack.c.l.b16 %v27
    %v153 = vunpack.c.h.b16 %v27
    %v154 = vunpack.c.l.b16 %v28
    %v155 = vunpack.c.h.b16 %v28
    %v156 = vunpack.c.l.b16 %v29
    %v157 = vpack.c.b16 %v150, %v143
    %v158 = vpack.c.b16 %v151, %v144
    %v159 = vpack.c.b16 %v152, %v145
    %v160 = vpack.c.b16 %v153, %v146
    %v161 = vpack.c.b16 %v154, %v147
    %v162 = vpack.c.b16 %v155, %v148
    %v163 = vpack.c.b16 %v156, %v149
    %v268 = vunpack.c.l.b16 %v30
    %v269 = vunpack.c.l.b16 %v31
    %v270 = vunpack.c.l.b16 %v32
    %v271 = vunpack.c.l.b16 %v33
    %v272 = vunpack.c.l.b16 %v34
    %v273 = vunpack.c.l.b16 %v35
    %v274 = vunpack.c.l.b16 %v36
    %v275 = vunpack.c.l.b16 %v37
    %v276 = vunpack.c.l.b16 %v38
    %v277 = vunpack.c.l.b16 %v39
    %v278 = vunpack.c.l.b16 %v40
    %v279 = vunpack.c.l.b16 %v41
    %v280 = vunpack.c.l.b16 %v42
    %v281 = vunpack.c.l.b16 %v43
    %v282 = vunpack.c.l.b16 %v44
    %v283 = vunpack.c.l.b16 %v45
    %v284 = vunpack.c.l.b16 %v46
    %v285 = vunpack.c.l.b16 %v47
    %v286 = vunpack.c.l.b16 %v48
    %v287 = vunpack.c.l.b16 %v49
    %v288 = vunpack.c.l.b16 %v50
    %v289 = vunpack.c.l.b16 %v51
    %v290 = vunpack.c.l.b16 %v52
    %v291 = vunpack.c.l.b16 %v53
    %v292 = vunpack.c.l.b16 %v54
    %v293 = vunpack.c.l.b16 %v55
    %v294 = vunpack.c.l.b16 %v56
    %v295 = vunpack.c.l.b16 %v57
    %v296 = vunpack.c.l.b16 %v58
    %v297 = vunpack.c.l.b16 %v59
    %v298 = vunpack.c.l.b16 %v60
    %v299 = vunpack.c.l.b16 %v61
    %v300 = vunpack.c.l.b16 %v62
    %v301 = vunpack.c.l.b16 %v63
    %v302 = vunpack.c.l.b16 %v64
    %v303 = vunpack.c.l.b16 %v65
    %v304 = vunpack.c.l.b16 %v66
    %v305 = vunpack.c.l.b16 %v67
    %v306 = vunpack.c.l.b16 %v68
    %v307 = vunpack.c.l.b16 %v69
    %v308 = vunpack.c.l.b16 %v70
    %v309 = vunpack.c.l.b16 %v71
    %v310 = vunpack.c.l.b16 %v72
    %v311 = vunpack.c.l.b16 %v73
    %v312 = vunpack.c.l.b16 %v74
    %v313 = vunpack.c.l.b16 %v75
    %v314 = vunpack.c.l.b16 %v76
    %v315 = vunpack.c.l.b16 %v77
    %v316 = vunpack.c.l.b16 %v78
    %v317 = vunpack.c.l.b16 %v79
    %v318 = vunpack.c.l.b16 %v80
    %v319 = vunpack.c.l.b16 %v81
    %v320 = vunpack.c.l.b16 %v82
    %v321 = vunpack.c.l.b16 %v83
    %v322 = vunpack.c.l.b16 %v84
    %v323 = vunpack.c.l.b16 %v85
    %v324 = vunpack.c.l.b16 %v86
    %v325 = vunpack.c.l.b16 %v87
    %v326 = vunpack.c.l.b16 %v88
    %v327 = vunpack.c.l.b16 %v89
    %v328 = vunpack.c.l.b16 %v90
    %v329 = vunpack.c.l.b16 %v91
    %v330 = vunpack.c.l.b16 %v92
    %v331 = vunpack.c.l.b16 %v93
    %v332 = vunpack.c.l.b16 %v94
    %v333 = vunpack.c.l.b16 %v95
    %v334 = vunpack.c.l.b16 %v96
    %v335 = vunpack.c.l.b16 %v97
    %v336 = vunpack.c.l.b16 %v98
    %v337 = vunpack.c.l.b16 %v99
    %v338 = vunpack.c.l.b16 %v100
    %v339 = vunpack.c.l.b16 %v101
    %v340 = vunpack.c.l.b16 %v102
    %v341 = vunpack.c.l.b16 %v103
    %v342 = vunpack.c.l.b16 %v104
    %v343 = vunpack.c.l.b16 %v105
    %v344 = vunpack.c.l.b16 %v106
    %v345 = vunpack.c.l.b16 %v107
    %v346 = vunpack.c.l.b16 %v108
    %v347 = vunpack.c.l.b16 %v109
    %v348 = vunpack.c.l.b16 %v110
    %v349 = vunpack.c.l.b16 %v111
    %v350 = vunpack.c.l.b16 %v112
    %v351 = vunpack.c.l.b16 %v113
    %v352 = vunpack.c.l.b16 %v114
    %v353 = vunpack.c.l.b16 %v115
    %v354 = vunpack.c.l.b16 %v116
    %v355 = vunpack.c.l.b16 %v117
    %v356 = vunpack.c.l.b16 %v118
    %v357 = vunpack.c.l.b16 %v119
    %v358 = vunpack.c.l.b16 %v120
    %v359 = vunpack.c.l.b16 %v121
    %v360 = vunpack.c.l.b16 %v122
    %v361 = vunpack.c.l.b16 %v123
    %v362 = vunpack.c.l.b16 %v124
    %v363 = vunpack.c.l.b16 %v125
    %v364 = vunpack.c.l.b16 %v126
    %v365 = vunpack.c.l.b16 %v127
    %v366 = vpack.c.b16 %v269, %v268
    %v367 = vpack.c.b16 %v271, %v270
    %v368 = vpack.c.b16 %v273, %v272
    %v369 = vpack.c.b16 %v275, %v274
    %v370 = vpack.c.b16 %v277, %v276
    %v371 = vpack.c.b16 %v279, %v278
    %v372 = vpack.c.b16 %v281, %v280
    %v373 = vpack.c.b16 %v283, %v282
    %v374 = vpack.c.b16 %v285, %v284
    %v375 = vpack.c.b16 %v287, %v286
    %v376 = vpack.c.b16 %v289, %v288
    %v377 = vpack.c.b16 %v291, %v290
    %v378 = vpack.c.b16 %v293, %v292
    %v379 = vpack.c.b16 %v295, %v294
    %v380 = vpack.c.b16 %v297, %v296
    %v381 = vpack.c.b16 %v299, %v298
    %v382 = vpack.c.b16 %v301, %v300
    %v383 = vpack.c.b16 %v303, %v302
    %v384 = vpack.c.b16 %v305, %v304
    %v385 = vpack.c.b16 %v307, %v306
    %v386 = vpack.c.b16 %v309, %v308
    %v387 = vpack.c.b16 %v311, %v310
    %v388 = vpack.c.b16 %v313, %v312
    %v389 = vpack.c.b16 %v315, %v314
    %v390 = vpack.c.b16 %v317, %v316
    %v391 = vpack.c.b16 %v319, %v318
    %v392 = vpack.c.b16 %v321, %v320
    %v393 = vpack.c.b16 %v323, %v322
    %v394 = vpack.c.b16 %v325, %v324
    %v395 = vpack.c.b16 %v327, %v326
    %v396 = vpack.c.b16 %v329, %v328
    %v397 = vpack.c.b16 %v331, %v330
    %v398 = vpack.c.b16 %v333, %v332
    %v399 = vpack.c.b16 %v335, %v334
    %v400 = vpack.c.b16 %v337, %v336
    %v401 = vpack.c.b16 %v339, %v338
    %v402 = vpack.c.b16 %v341, %v340
    %v403 = vpack.c.b16 %v343, %v342
    %v404 = vpack.c.b16 %v345, %v344
    %v405 = vpack.c.b16 %v347, %v346
    %v406 = vpack.c.b16 %v349, %v348
    %v407 = vpack.c.b16 %v351, %v350
    %v408 = vpack.c.b16 %v353, %v352
    %v409 = vpack.c.b16 %v355, %v354
    %v410 = vpack.c.b16 %v357, %v356
    %v411 = vpack.c.b16 %v359, %v358
    %v412 = vpack.c.b16 %v361, %v360
    %v413 = vpack.c.b16 %v363, %v362
    %v414 = vpack.c.b16 %v365, %v364
    %vm464 = vcmask 130048
    %v466 = vsel %vm464, %v163, 0
    %468 = vmatprep.subr.bf16.mxu0 0
    %469 = vmatpush1.bf16.msra.mxu0 %v366
    %470 = vmatprep.subr.bf16.mxu0 0
    %471 = vmatpush1.bf16.msra.mxu0 %v367
    %472 = vmatprep.subr.bf16.mxu0 0
    %473 = vmatpush1.bf16.msra.mxu0 %v368
    %474 = vmatprep.subr.bf16.mxu0 0
    %475 = vmatpush1.bf16.msra.mxu0 %v369
    %476 = vmatprep.subr.bf16.mxu0 0
    %477 = vmatpush1.bf16.msra.mxu0 %v370
    %478 = vmatprep.subr.bf16.mxu0 0
    %479 = vmatpush1.bf16.msra.mxu0 %v371
    %480 = vmatprep.subr.bf16.mxu0 0
    %481 = vmatpush1.bf16.msra.mxu0 %v372
    %482 = vmatprep.subr.bf16.mxu0 0
    %483 = vmatpush1.bf16.msra.mxu0 %v373
    %484 = vmatprep.subr.bf16.mxu0 0
    %485 = vmatpush1.bf16.msra.mxu0 %v374
    %486 = vmatprep.subr.bf16.mxu0 0
    %487 = vmatpush1.bf16.msra.mxu0 %v375
    %488 = vmatprep.subr.bf16.mxu0 0
    %489 = vmatpush1.bf16.msra.mxu0 %v376
    %490 = vmatprep.subr.bf16.mxu0 0
    %491 = vmatpush1.bf16.msra.mxu0 %v377
    %492 = vmatprep.subr.bf16.mxu0 0
    %493 = vmatpush1.bf16.msra.mxu0 %v378
    %494 = vmatprep.subr.bf16.mxu0 0
    %495 = vmatpush1.bf16.msra.mxu0 %v379
    %496 = vmatprep.subr.bf16.mxu0 0
    %497 = vmatpush1.bf16.msra.mxu0 %v380
    %498 = vmatprep.subr.bf16.mxu0 0
    %499 = vmatpush1.bf16.msra.mxu0 %v381
    %500 = vmatprep.mubr.bf16.mxu0 %v158
    %501 = vmatmul.mubr.bf16.gmra.mrb[0].mxu0 %v157
    %v502 = vpop.f32.mrb[0].mxu0
    %v503 = vadd.f32 %v133, %v502
    %v504 = vpop.f32.mrb[0].mxu0
    %v505 = vpop.f32.mrb[0].mxu0
    %v506 = vadd.f32 %v133, %v505
    %v507 = vpop.f32.mrb[0].mxu0
    %508 = vdwg.mxu0
    %509 = vmatprep.subr.bf16.mxu0 0
    %510 = vmatpush1.bf16.msra.mxu0 %v382
    %511 = vmatprep.subr.bf16.mxu0 0
    %512 = vmatpush1.bf16.msra.mxu0 %v383
    %513 = vmatprep.subr.bf16.mxu0 0
    %514 = vmatpush1.bf16.msra.mxu0 %v384
    %515 = vmatprep.subr.bf16.mxu0 0
    %516 = vmatpush1.bf16.msra.mxu0 %v385
    %517 = vmatprep.subr.bf16.mxu0 0
    %518 = vmatpush1.bf16.msra.mxu0 %v386
    %519 = vmatprep.subr.bf16.mxu0 0
    %520 = vmatpush1.bf16.msra.mxu0 %v387
    %521 = vmatprep.subr.bf16.mxu0 0
    %522 = vmatpush1.bf16.msra.mxu0 %v388
    %523 = vmatprep.subr.bf16.mxu0 0
    %524 = vmatpush1.bf16.msra.mxu0 %v389
    %525 = vmatprep.subr.bf16.mxu0 0
    %526 = vmatpush1.bf16.msra.mxu0 %v390
    %527 = vmatprep.subr.bf16.mxu0 0
    %528 = vmatpush1.bf16.msra.mxu0 %v391
    %529 = vmatprep.subr.bf16.mxu0 0
    %530 = vmatpush1.bf16.msra.mxu0 %v392
    %531 = vmatprep.subr.bf16.mxu0 0
    %532 = vmatpush1.bf16.msra.mxu0 %v393
    %533 = vmatprep.subr.bf16.mxu0 0
    %534 = vmatpush1.bf16.msra.mxu0 %v394
    %535 = vmatprep.subr.bf16.mxu0 0
    %536 = vmatpush1.bf16.msra.mxu0 %v395
    %537 = vmatprep.subr.bf16.mxu0 0
    %538 = vmatpush1.bf16.msra.mxu0 %v396
    %539 = vmatprep.subr.bf16.mxu0 0
    %540 = vmatpush1.bf16.msra.mxu0 %v397
    %541 = vmatprep.mubr.bf16.mxu0 %v160
    %542 = vmatmul.mubr.bf16.gmra.mrb[0].mxu0 %v159
    %v543 = vpop.f32.mrb[0].mxu0
    %v544 = vadd.f32 %v503, %v543
    %v545 = vpop.f32.mrb[0].mxu0
    %v546 = vpop.f32.mrb[0].mxu0
    %v547 = vadd.f32 %v506, %v546
    %v548 = vpop.f32.mrb[0].mxu0
    %549 = vdwg.mxu0
    %550 = vmatprep.subr.bf16.mxu0 0
    %551 = vmatpush1.bf16.msra.mxu0 %v398
    %552 = vmatprep.subr.bf16.mxu0 0
    %553 = vmatpush1.bf16.msra.mxu0 %v399
    %554 = vmatprep.subr.bf16.mxu0 0
    %555 = vmatpush1.bf16.msra.mxu0 %v400
    %556 = vmatprep.subr.bf16.mxu0 0
    %557 = vmatpush1.bf16.msra.mxu0 %v401
    %558 = vmatprep.subr.bf16.mxu0 0
    %559 = vmatpush1.bf16.msra.mxu0 %v402
    %560 = vmatprep.subr.bf16.mxu0 0
    %561 = vmatpush1.bf16.msra.mxu0 %v403
    %562 = vmatprep.subr.bf16.mxu0 0
    %563 = vmatpush1.bf16.msra.mxu0 %v404
    %564 = vmatprep.subr.bf16.mxu0 0
    %565 = vmatpush1.bf16.msra.mxu0 %v405
    %566 = vmatprep.subr.bf16.mxu0 0
    %567 = vmatpush1.bf16.msra.mxu0 %v406
    %568 = vmatprep.subr.bf16.mxu0 0
    %569 = vmatpush1.bf16.msra.mxu0 %v407
    %570 = vmatprep.subr.bf16.mxu0 0
    %571 = vmatpush1.bf16.msra.mxu0 %v408
    %572 = vmatprep.subr.bf16.mxu0 0
    %573 = vmatpush1.bf16.msra.mxu0 %v409
    %574 = vmatprep.subr.bf16.mxu0 0
    %575 = vmatpush1.bf16.msra.mxu0 %v410
    %576 = vmatprep.subr.bf16.mxu0 0
    %577 = vmatpush1.bf16.msra.mxu0 %v411
    %578 = vmatprep.subr.bf16.mxu0 0
    %579 = vmatpush1.bf16.msra.mxu0 %v412
    %580 = vmatprep.subr.bf16.mxu0 0
    %581 = vmatpush1.bf16.msra.mxu0 %v413
    %582 = vmatprep.mubr.bf16.mxu0 %v162
    %583 = vmatmul.mubr.bf16.gmra.mrb[0].mxu0 %v161
    %v584 = vpop.f32.mrb[0].mxu0
    %v585 = vadd.f32 %v544, %v584
    %v586 = vpop.f32.mrb[0].mxu0
    %v587 = vpop.f32.mrb[0].mxu0
    %v588 = vadd.f32 %v547, %v587
    %v589 = vpop.f32.mrb[0].mxu0
    %590 = vdwg.mxu0
    %591 = vmatprep.subr.bf16.mxu0 0
    %592 = vmatpush1.bf16.msra.mxu0 %v414
    %593 = vmatprep.subr.bf16.mxu0 0
    %594 = vmatpush1.bf16.msra.mxu0 0
    %595 = vmatprep.subr.bf16.mxu0 0
    %596 = vmatpush1.bf16.msra.mxu0 0
    %597 = vmatprep.subr.bf16.mxu0 0
    %598 = vmatpush1.bf16.msra.mxu0 0
    %599 = vmatprep.subr.bf16.mxu0 0
    %600 = vmatpush1.bf16.msra.mxu0 0
    %601 = vmatprep.subr.bf16.mxu0 0
    %602 = vmatpush1.bf16.msra.mxu0 0
    %603 = vmatprep.subr.bf16.mxu0 0
    %604 = vmatpush1.bf16.msra.mxu0 0
    %605 = vmatprep.subr.bf16.mxu0 0
    %606 = vmatpush1.bf16.msra.mxu0 0
    %607 = vmatprep.subr.bf16.mxu0 0
    %608 = vmatpush1.bf16.msra.mxu0 0
    %609 = vmatprep.subr.bf16.mxu0 0
    %610 = vmatpush1.bf16.msra.mxu0 0
    %611 = vmatprep.subr.bf16.mxu0 0
    %612 = vmatpush1.bf16.msra.mxu0 0
    %613 = vmatprep.subr.bf16.mxu0 0
    %614 = vmatpush1.bf16.msra.mxu0 0
    %615 = vmatprep.subr.bf16.mxu0 0
    %616 = vmatpush1.bf16.msra.mxu0 0
    %617 = vmatprep.subr.bf16.mxu0 0
    %618 = vmatpush1.bf16.msra.mxu0 0
    %619 = vmatprep.subr.bf16.mxu0 0
    %620 = vmatpush1.bf16.msra.mxu0 0
    %621 = vmatprep.subr.bf16.mxu0 0
    %622 = vmatpush1.bf16.msra.mxu0 0
    %623 = vmatprep.mubr.bf16.mxu0 0
    %624 = vmatmul.mubr.bf16.gmra.mrb[0].mxu0 %v466
    %v625 = vpop.f32.mrb[0].mxu0
    %v626 = vadd.f32 %v585, %v625
    %v627 = vpop.f32.mrb[0].mxu0
    %v628 = vpop.f32.mrb[0].mxu0
    %v629 = vadd.f32 %v588, %v628
    %v630 = vpop.f32.mrb[0].mxu0
    %631 = vdwg.mxu0
    %v632 = vmax.f32 %v626, 0.0
    %v633 = vmax.f32 %v629, 0.0
    %v634 = vld [vmem:[%s3] sm:$0xff]
    %v635 = vld [vmem:[%s3 + $0x8] sm:$0xff]
    %v636 = vld [vmem:[%s3 + $0x10] sm:$0xff]
    %v637 = vld [vmem:[%s3 + $0x18] sm:$0xff]
    %v638 = vld [vmem:[%s3 + $0x20] sm:$0xff]
    %v639 = vld [vmem:[%s3 + $0x28] sm:$0xff]
    %v640 = vld [vmem:[%s3 + $0x30] sm:$0xff]
    %v641 = vld [vmem:[%s3 + $0x38] sm:$0xff]
    %v642 = vld [vmem:[%s4] sm:$0x1]
    %v644 = vlaneseq
    %v645 = vshrl.u32 %v644, 7
    %v646 = vsub.s32 0, %v645
    %v647 = vrot.slane %v642, %v646
    %vm649 = vcmask 523264
    %v651 = vsel %vm649, %v632, 0
    %v654 = vsel %vm649, %v633, 0
    %656 = vmatprep.subr.mxu0 0.0
    %657 = vmatpush1.msra.mxu0 %v634
    %658 = vmatprep.subr.mxu0 0.0
    %659 = vmatpush1.msra.mxu0 %v635
    %660 = vmatprep.subr.mxu0 0.0
    %661 = vmatpush1.msra.mxu0 %v636
    %662 = vmatprep.subr.mxu0 0.0
    %663 = vmatpush1.msra.mxu0 %v637
    %664 = vmatprep.subr.mxu0 0.0
    %665 = vmatpush1.msra.mxu0 %v638
    %666 = vmatprep.subr.mxu0 0.0
    %667 = vmatpush1.msra.mxu0 %v639
    %668 = vmatprep.subr.mxu0 0.0
    %669 = vmatpush1.msra.mxu0 %v640
    %670 = vmatprep.subr.mxu0 0.0
    %671 = vmatpush1.msra.mxu0 %v641
    %672 = vmatprep.subr.mxu0 0.0
    %673 = vmatpush1.msra.mxu0 0.0
    %674 = vmatprep.subr.mxu0 0.0
    %675 = vmatpush1.msra.mxu0 0.0
    %676 = vmatprep.subr.mxu0 0.0
    %677 = vmatpush1.msra.mxu0 0.0
    %678 = vmatprep.subr.mxu0 0.0
    %679 = vmatpush1.msra.mxu0 0.0
    %680 = vmatprep.subr.mxu0 0.0
    %681 = vmatpush1.msra.mxu0 0.0
    %682 = vmatprep.subr.mxu0 0.0
    %683 = vmatpush1.msra.mxu0 0.0
    %684 = vmatprep.subr.mxu0 0.0
    %685 = vmatpush1.msra.mxu0 0.0
    %686 = vmatprep.subr.mxu0 0.0
    %687 = vmatpush1.msra.mxu0 0.0
    %688 = vmatprep.subr.mxu0 0.0
    %689 = vmatpush1.msra.mxu0 0.0
    %690 = vmatprep.subr.mxu0 0.0
    %691 = vmatpush1.msra.mxu0 0.0
    %692 = vmatprep.subr.mxu0 0.0
    %693 = vmatpush1.msra.mxu0 0.0
    %694 = vmatprep.subr.mxu0 0.0
    %695 = vmatpush1.msra.mxu0 0.0
    %696 = vmatprep.subr.mxu0 0.0
    %697 = vmatpush1.msra.mxu0 0.0
    %698 = vmatprep.subr.mxu0 0.0
    %699 = vmatpush1.msra.mxu0 0.0
    %700 = vmatprep.subr.mxu0 0.0
    %701 = vmatpush1.msra.mxu0 0.0
    %702 = vmatprep.subr.mxu0 0.0
    %703 = vmatpush1.msra.mxu0 0.0
    %704 = vmatprep.subr.mxu0 0.0
    %705 = vmatpush1.msra.mxu0 0.0
    %706 = vmatprep.subr.mxu0 0.0
    %707 = vmatpush1.msra.mxu0 0.0
    %708 = vmatprep.subr.mxu0 0.0
    %709 = vmatpush1.msra.mxu0 0.0
    %710 = vmatprep.subr.mxu0 0.0
    %711 = vmatpush1.msra.mxu0 0.0
    %712 = vmatprep.subr.mxu0 0.0
    %713 = vmatpush1.msra.mxu0 0.0
    %714 = vmatprep.subr.mxu0 0.0
    %715 = vmatpush1.msra.mxu0 0.0
    %716 = vmatprep.subr.mxu0 0.0
    %717 = vmatpush1.msra.mxu0 0.0
    %718 = vmatprep.subr.mxu0 0.0
    %719 = vmatpush1.msra.mxu0 0.0
    %720 = vmatprep.mubr.f32.mxu0 0.0
    %721 = vmatmul.mubr.f32.gmra.mrb[0].mxu0 %v651
    %v722 = vpop.f32.mrb[0].mxu0
    %v723 = vadd.f32 %v647, %v722
    %v724 = vpop.f32.mrb[0].mxu0
    %725 = vmatprep.mubr.f32.mxu0 0.0
    %726 = vmatmul.mubr.f32.gmra.mrb[0].mxu0 %v654
    %v727 = vpop.f32.mrb[0].mxu0
    %v728 = vadd.f32 %v647, %v727
    %v729 = vpop.f32.mrb[0].mxu0
    %730 = vdwg.mxu0
    %vm731 = vcmask 80896
    %v732 = vsel %vm731, %v723, -inf
    %733 = vmax.xlane.f32.xlu0 %v732
    %v734 = vpop.xlane.xlu0 %733
    %v735 = vsel %vm731, %v728, -inf
    %736 = vmax.xlane.f32.xlu0 %v735
    %v737 = vpop.xlane.xlu0 %736
    %v738 = vsub.f32 %v723, %v734
    %v739 = vsub.f32 %v728, %v737
    %v740 = vmul.f32 %v738, 1.442695
    %v741 = vpow.pop %v740
    %v742 = vmul.f32 %v739, 1.442695
    %v743 = vpow.pop %v742
    %v744 = vsel %vm731, %v741, 0.0
    %745 = vadd.xlane.f32.xlu0 %v744
    %v746 = vpop.xlane.xlu0 %745
    %v747 = vsel %vm731, %v743, 0.0
    %748 = vadd.xlane.f32.xlu0 %v747
    %v749 = vpop.xlane.xlu0 %748
    %v750 = vlog2.pop %v746
    %v751 = vmul.f32 %v750, 0.6931472
    %v752 = vlog2.pop %v749
    %v753 = vmul.f32 %v752, 0.6931472
    %v754 = vsub.f32 %v738, %v751
    %v755 = vsub.f32 %v739, %v753
    %756 = vst.msk [vmem:[#allocation2] sm:$0xff] %vm731, %v754
    %757 = vst.msk [vmem:[#allocation2 + $0x8] sm:$0xff] %vm731, %v755
    // Predicated region
    $region22: #{tpu_custom_call.1} parent=1 // pred_check
      _
    $region23: #{tpu_custom_call.1} parent=1 // pred_check_branch
      %759 = sbr.rel (0) target = $region25
    $region24: #{tpu_custom_call.1} parent=1 // pred_region
      %s761 = ssub.s32 256, 256
      %762 = vsyncadd [#allocation3], %s761
      %s763 = sshll.u32 [#allocation2], 4
      %s764 = int_to_ptr.vmem [resolvable:$true] %s763
      %769 = dma.vmem_to_hbm [thread:$0]  %s764, 256, %s5, [#allocation3], 128, 128, 8
    $region25: #{tpu_custom_call.1} parent=1 // pred_fallthru
      _
    // Predicated region
    $region26: #{tpu_custom_call.1} parent=1 // pred_check
      _
    $region27: #{tpu_custom_call.1} parent=1 // pred_check_branch
      %771 = sbr.rel (0) target = $region29
    $region28: #{tpu_custom_call.1} parent=1 // pred_region
      %772 = dma.done [#allocation3], 256
    $region29: #{tpu_custom_call.1} parent=1 // pred_fallthru
      _
    %773 = vsyncpa [#allocation3], 1

</llo_original>
